<compile_context>
chip_gen: v7x
topology: tpu7x:2x2x1
jax: 0.10.0
libtpu: 0.0.40
codegen_flags: <defaults>
</compile_context>

<pallas_src>
import functools

import jax
import jax.numpy as jnp
from jax.experimental import pallas as pl
from jax.experimental.pallas import tpu as pltpu

PACK = 4               # batch elements packed per (sublane-dense) column
MAX_TILE_COLS = 32768  # columns per block cap => 4*32768 = 131072 batch elems / step


def _round_up(n, m):
    return ((n + m - 1) // m) * m


def _mlp_kernel(xp_ref, w1_ref, b1_ref, w2_ref, b2_ref, op_ref):
    # Packed-transposed form; each column holds PACK independent batch elems.
    #   h_packed = blockdiag(PACK x w1^T) @ x_packed   : (32,8) @ (8,T)
    #   y_packed = blockdiag(PACK x w2^T) @ h_packed   : (8,32) @ (32,T)
    h = jnp.dot(w1_ref[...], xp_ref[...], preferred_element_type=jnp.float32)
    h = jnp.maximum(h + b1_ref[...], 0.0)
    y = jnp.dot(w2_ref[...], h, preferred_element_type=jnp.float32)
    op_ref[...] = (y + b2_ref[...]).astype(op_ref.dtype)


@functools.partial(jax.jit, static_argnames=("max_tile_cols",))
def classical_net_forward(x, w1, b1, w2, b2, *, max_tile_cols=MAX_TILE_COLS):
    """relu(x @ w1 + b1) @ w2 + b2 with w1 = fc1.weight.T, w2 = fc2.weight.T.

    x: (B, 2) f32  ->  (B, 2) f32.  Matches the PyTorch ClassicalNet forward.
    """
    B = x.shape[0]
    x = x.astype(jnp.float32)

    # ---- layout plumbing (all inside this jit -> fused by XLA) -------------
    cols_needed = pl.cdiv(B, PACK)
    tile_cols = min(max_tile_cols, _round_up(cols_needed, 128))
    n_blocks = pl.cdiv(cols_needed, tile_cols)
    cols_pad = n_blocks * tile_cols
    B_pad = cols_pad * PACK

    # (B,2) -> zero-pad -> (cols_pad, 8) -> (8, cols_pad): 4 batch elements per
    # column so x / y tiles are dense in both sublanes and lanes.
    xp = jnp.pad(x, ((0, B_pad - B), (0, 0))).reshape(cols_pad, PACK * 2).T

    # Block-diagonal packed weights (tiny; built once per call).
    eye = jnp.eye(PACK, dtype=jnp.float32)
    w1big = jnp.kron(eye, w1.T.astype(jnp.float32))                 # (32, 8)
    w2big = jnp.kron(eye, w2.T.astype(jnp.float32))                 # (8, 32)
    b1big = jnp.tile(b1.astype(jnp.float32), PACK).reshape(-1, 1)   # (32, 1)
    b2big = jnp.tile(b2.astype(jnp.float32), PACK).reshape(-1, 1)   # (8, 1)

    cost = pl.CostEstimate(
        flops=2 * B_pad * (2 * 8 + 8 * 2),
        transcendentals=0,
        bytes_accessed=4 * B_pad * (2 + 2) + 4 * (32 * 8 + 8 * 32 + 32 + 8),
    )

    out_p = pl.pallas_call(
        _mlp_kernel,
        out_shape=jax.ShapeDtypeStruct((PACK * 2, cols_pad), jnp.float32),
        grid_spec=pltpu.PrefetchScalarGridSpec(
            num_scalar_prefetch=0,
            grid=(n_blocks,),
            in_specs=[
                # Packed x, tiled along the batch-column (lane) axis.
                pl.BlockSpec((PACK * 2, tile_cols), lambda i: (0, i)),
                # Weights / biases: constant block index -> VMEM-resident.
                pl.BlockSpec((PACK * 8, 8), lambda i: (0, 0)),
                pl.BlockSpec((PACK * 8, 1), lambda i: (0, 0)),
                pl.BlockSpec((PACK * 2, PACK * 8), lambda i: (0, 0)),
                pl.BlockSpec((PACK * 2, 1), lambda i: (0, 0)),
            ],
            out_specs=pl.BlockSpec((PACK * 2, tile_cols), lambda i: (0, i)),
        ),
        compiler_params=pltpu.CompilerParams(
            dimension_semantics=("parallel",)),
        cost_estimate=cost,
    )(xp, w1big, b1big, w2big, b2big)

    # Unpack: (8, cols_pad) -> (cols_pad, 8) -> (B_pad, 2) -> (B, 2).
    return out_p.T.reshape(B_pad, 2)[:B]


def init_params(key):
    """Deterministic init mirroring torch.nn.Linear defaults
    (uniform(-1/sqrt(fan_in), 1/sqrt(fan_in)) for weight and bias)."""
    k1, k2, k3, k4 = jax.random.split(key, 4)
    bound1 = 1.0 / jnp.sqrt(2.0)   # fc1 fan_in = 2
    bound2 = 1.0 / jnp.sqrt(8.0)   # fc2 fan_in = 8
    w1 = jax.random.uniform(k1, (2, 8), jnp.float32, -bound1, bound1)
    b1 = jax.random.uniform(k2, (8,), jnp.float32, -bound1, bound1)
    w2 = jax.random.uniform(k3, (8, 2), jnp.float32, -bound2, bound2)
    b2 = jax.random.uniform(k4, (2,), jnp.float32, -bound2, bound2)
    return w1, b1, w2, b2


def _reference(x, w1, b1, w2, b2):
    return jnp.maximum(x @ w1 + b1[None, :], 0.0) @ w2 + b2[None, :]


if __name__ == "__main__":
    key = jax.random.PRNGKey(0)
    k_x1, k_x2, k_p = jax.random.split(key, 3)
    w1, b1, w2, b2 = init_params(k_p)

    ok = True

    # Small smoke test (single grid step; pads up to one 128-column block).
    # NOTE: at B=8 the fixed pallas_call overhead dominates; a real deployment
    # would route tiny batches through plain jnp and reserve the kernel for
    # large B where it runs near the HBM roofline.
    B_small = 8
    x_small = jax.random.normal(k_x1, (B_small, 2), jnp.float32)
    out_small = jax.block_until_ready(
        classical_net_forward(x_small, w1, b1, w2, b2))
    ref_small = _reference(x_small, w1, b1, w2, b2)
    ok &= out_small.shape == (B_small, 2)
    ok &= bool(jnp.allclose(out_small, ref_small, atol=1e-5, rtol=1e-5))

    # Ragged batch over multiple grid blocks: small tile cap exercises the
    # pipelined multi-step grid + packing + padding/slicing path while keeping
    # the example shapes small.
    B_big = 997
    x_big = jax.random.normal(k_x2, (B_big, 2), jnp.float32)
    out_big = jax.block_until_ready(
        classical_net_forward(x_big, w1, b1, w2, b2, max_tile_cols=128))
    ref_big = _reference(x_big, w1, b1, w2, b2)
    ok &= out_big.shape == (B_big, 2)
    ok &= bool(jnp.allclose(out_big, ref_big, atol=1e-5, rtol=1e-5))

    if ok:
        print("KERNEL_OK")
    else:
        raise SystemExit("kernel output mismatch vs reference")
</pallas_src>

<mosaic_0001>
module attributes {stable_mosaic.version = 11 : i64} {
  func.func @_mlp_kernel(%arg0: i32, %arg1: memref<8x128xf32, #tpu.memory_space<vmem>>, %arg2: memref<32x8xf32, #tpu.memory_space<vmem>>, %arg3: memref<32x1xf32, #tpu.memory_space<vmem>>, %arg4: memref<8x32xf32, #tpu.memory_space<vmem>>, %arg5: memref<8x1xf32, #tpu.memory_space<vmem>>, %arg6: memref<8x128xf32, #tpu.memory_space<vmem>>) attributes {dimension_semantics = [#tpu.dimension_semantics<parallel>], iteration_bounds = array<i64: 1>, scalar_prefetch = 0 : i64, scratch_operands = 0 : i64, tpu.core_type = #tpu.core_type<tc>, window_params = [{transform_indices = @transform_0, window_bounds = array<i64: 8, 128>}, {pipeline_mode = #tpu.pipeline_mode<synchronous>, transform_indices = @transform_1, window_bounds = array<i64: 32, 8>}, {pipeline_mode = #tpu.pipeline_mode<synchronous>, transform_indices = @transform_2, window_bounds = array<i64: 32, 1>}, {pipeline_mode = #tpu.pipeline_mode<synchronous>, transform_indices = @transform_3, window_bounds = array<i64: 8, 32>}, {pipeline_mode = #tpu.pipeline_mode<synchronous>, transform_indices = @transform_4, window_bounds = array<i64: 8, 1>}, {transform_indices = @transform_5, window_bounds = array<i64: 8, 128>}]} {
    %c0 = arith.constant 0 : index
    %c0_0 = arith.constant 0 : index
    %0 = vector.load %arg2[%c0, %c0_0] : memref<32x8xf32, #tpu.memory_space<vmem>>, vector<32x8xf32>
    %c0_1 = arith.constant 0 : index
    %c0_2 = arith.constant 0 : index
    %1 = vector.load %arg1[%c0_1, %c0_2] : memref<8x128xf32, #tpu.memory_space<vmem>>, vector<8x128xf32>
    %cst = arith.constant dense<0.000000e+00> : vector<32x128xf32>
    %2 = tpu.matmul %0, %1, %cst {dimension_numbers = #tpu.dot_dimension_numbers<[1], [0], [0], [1], [0, 0, 1, 1], [], []>} : vector<32x8xf32>, vector<8x128xf32>, vector<32x128xf32> -> vector<32x128xf32>
    %c0_3 = arith.constant 0 : index
    %c0_4 = arith.constant 0 : index
    %3 = vector.load %arg3[%c0_3, %c0_4] : memref<32x1xf32, #tpu.memory_space<vmem>>, vector<32x1xf32>
    %4 = vector.broadcast %3 : vector<32x1xf32> to vector<32x128xf32>
    %5 = arith.addf %2, %4 : vector<32x128xf32>
    %cst_5 = arith.constant 0.000000e+00 : f32
    %6 = vector.broadcast %cst_5 : f32 to vector<32x128xf32>
    %7 = arith.maximumf %5, %6 : vector<32x128xf32>
    %c0_6 = arith.constant 0 : index
    %c0_7 = arith.constant 0 : index
    %8 = vector.load %arg4[%c0_6, %c0_7] : memref<8x32xf32, #tpu.memory_space<vmem>>, vector<8x32xf32>
    %cst_8 = arith.constant dense<0.000000e+00> : vector<8x128xf32>
    %9 = tpu.matmul %8, %7, %cst_8 {dimension_numbers = #tpu.dot_dimension_numbers<[1], [0], [0], [1], [0, 0, 1, 1], [], []>} : vector<8x32xf32>, vector<32x128xf32>, vector<8x128xf32> -> vector<8x128xf32>
    %c0_9 = arith.constant 0 : index
    %c0_10 = arith.constant 0 : index
    %10 = vector.load %arg5[%c0_9, %c0_10] : memref<8x1xf32, #tpu.memory_space<vmem>>, vector<8x1xf32>
    %11 = vector.broadcast %10 : vector<8x1xf32> to vector<8x128xf32>
    %12 = arith.addf %9, %11 : vector<8x128xf32>
    %c0_11 = arith.constant 0 : index
    %c0_12 = arith.constant 0 : index
    %13 = vector.load %arg6[%c0_11, %c0_12] : memref<8x128xf32, #tpu.memory_space<vmem>>, vector<8x128xf32>
    tpu.vector_store %arg6[%c0_11, %c0_12], %12 {strides = array<i32>} : memref<8x128xf32, #tpu.memory_space<vmem>>, vector<8x128xf32>,
    return
  }
  func.func @transform_0(%arg0: i32) -> (i32, i32) {
    %c0_i32 = arith.constant 0 : i32
    %c0_i32_0 = arith.constant 0 : i32
    return %c0_i32, %arg0 : i32, i32
  }
  func.func @transform_1(%arg0: i32) -> (i32, i32) {
    %c0_i32 = arith.constant 0 : i32
    %c0_i32_0 = arith.constant 0 : i32
    %c0_i32_1 = arith.constant 0 : i32
    return %c0_i32, %c0_i32_0 : i32, i32
  }
  func.func @transform_2(%arg0: i32) -> (i32, i32) {
    %c0_i32 = arith.constant 0 : i32
    %c0_i32_0 = arith.constant 0 : i32
    %c0_i32_1 = arith.constant 0 : i32
    return %c0_i32, %c0_i32_0 : i32, i32
  }
  func.func @transform_3(%arg0: i32) -> (i32, i32) {
    %c0_i32 = arith.constant 0 : i32
    %c0_i32_0 = arith.constant 0 : i32
    %c0_i32_1 = arith.constant 0 : i32
    return %c0_i32, %c0_i32_0 : i32, i32
  }
  func.func @transform_4(%arg0: i32) -> (i32, i32) {
    %c0_i32 = arith.constant 0 : i32
    %c0_i32_0 = arith.constant 0 : i32
    %c0_i32_1 = arith.constant 0 : i32
    return %c0_i32, %c0_i32_0 : i32, i32
  }
  func.func @transform_5(%arg0: i32) -> (i32, i32) {
    %c0_i32 = arith.constant 0 : i32
    %c0_i32_0 = arith.constant 0 : i32
    return %c0_i32, %arg0 : i32, i32
  }
}

</mosaic_0001>

<llo_original>
// kernel: tile.13
$region0: #{tile.13}
  #allocation0 [shape = 's32[1]{0}', space=sflag, size = 0x4, scoped, tag = 'scoped memory for tile.13']
  %s0 = inlined_call_operand.vmem [shape: f32[8], index: 0, kind: input, shape index: {}]
  %s1 = inlined_call_operand.vmem [shape: f32[4,8], index: 1, kind: output, shape index: {}]
  // Predicated region
  $region2: #{tile.13} parent=0 // pred_check
    _
  $region3: #{tile.13} parent=0 // pred_check_branch
    %3 = sbr.rel (0) target = $region5
  $region4: #{tile.13} parent=0 // pred_region
    _
  $region5: #{tile.13} parent=0 // pred_fallthru
    _
  %v4 = vld [vmem:[%s0] ss:$0 sm:$0xff]
  %5 = vst [vmem:[%s1] sm:$0xf] %v4

// kernel: tile.0
$region0: #{tile.0}
  %s0 = inlined_call_operand.vmem [shape: f32[4,8], index: 0, kind: input, shape index: {}]
  %s1 = inlined_call_operand.vmem [shape: f32[32,1], index: 1, kind: output, shape index: {}]
  $region1: #{tile.0} parent=0
    #allocation0 [shape = 'u8[4096]{0}', space=vmem, size = 0x1000, scoped, tag = 'scoped mem for input reshape']
    %s3 = sshllo.u32 0, 4
    %v4 = vld [vmem:[%s0] sm:%s3]
    %5 = vst [vmem:[#allocation0] sm:%s3] %v4
    %v6 = vld [vmem:[#allocation0] sm:$0xf]
    %vm7 = vcmask 7168
    %8 = vst.msk [vmem:[%s1] ss:$8 sm:$0xf] %vm7, %v6
    %v9 = vld [vmem:[#allocation0] sm:$0xf]
    %10 = vrot.lane.b32.xlu0 %v9, 127
    %v11 = vpop.permute.xlu0 %10
    %vm12 = vcmask 7168
    %s13 = scalar_lea.vmem %s1, 1
    %14 = vst.msk [vmem:[%s13] ss:$8 sm:$0xf] %vm12, %v11
    %v15 = vld [vmem:[#allocation0] sm:$0xf]
    %16 = vrot.lane.b32.xlu0 %v15, 126
    %v17 = vpop.permute.xlu0 %16
    %vm18 = vcmask 7168
    %s19 = scalar_lea.vmem %s1, 2
    %20 = vst.msk [vmem:[%s19] ss:$8 sm:$0xf] %vm18, %v17
    %v21 = vld [vmem:[#allocation0] sm:$0xf]
    %22 = vrot.lane.b32.xlu0 %v21, 125
    %v23 = vpop.permute.xlu0 %22
    %vm24 = vcmask 7168
    %s25 = scalar_lea.vmem %s1, 3
    %26 = vst.msk [vmem:[%s25] ss:$8 sm:$0xf] %vm24, %v23
    %v27 = vld [vmem:[#allocation0] sm:$0xf]
    %28 = vrot.lane.b32.xlu0 %v27, 124
    %v29 = vpop.permute.xlu0 %28
    %vm30 = vcmask 7168
    %s31 = scalar_lea.vmem %s1, 4
    %32 = vst.msk [vmem:[%s31] ss:$8 sm:$0xf] %vm30, %v29
    %v33 = vld [vmem:[#allocation0] sm:$0xf]
    %34 = vrot.lane.b32.xlu0 %v33, 123
    %v35 = vpop.permute.xlu0 %34
    %vm36 = vcmask 7168
    %s37 = scalar_lea.vmem %s1, 5
    %38 = vst.msk [vmem:[%s37] ss:$8 sm:$0xf] %vm36, %v35
    %v39 = vld [vmem:[#allocation0] sm:$0xf]
    %40 = vrot.lane.b32.xlu0 %v39, 122
    %v41 = vpop.permute.xlu0 %40
    %vm42 = vcmask 7168
    %s43 = scalar_lea.vmem %s1, 6
    %44 = vst.msk [vmem:[%s43] ss:$8 sm:$0xf] %vm42, %v41
    %v45 = vld [vmem:[#allocation0] sm:$0xf]
    %46 = vrot.lane.b32.xlu0 %v45, 121
    %v47 = vpop.permute.xlu0 %46
    %vm48 = vcmask 7168
    %s49 = scalar_lea.vmem %s1, 7
    %50 = vst.msk [vmem:[%s49] ss:$8 sm:$0xf] %vm48, %v47

// kernel: tile.18
$region0: #{tile.18}
  #allocation0 [shape = 's32[1]{0}', space=sflag, size = 0x4, scoped, tag = 'scoped memory for tile.18']
  %s0 = inlined_call_operand.vmem [shape: f32[2], index: 0, kind: input, shape index: {}]
  %s1 = inlined_call_operand.vmem [shape: f32[4,2], index: 1, kind: output, shape index: {}]
  // Predicated region
  $region2: #{tile.18} parent=0 // pred_check
    _
  $region3: #{tile.18} parent=0 // pred_check_branch
    %3 = sbr.rel (0) target = $region5
  $region4: #{tile.18} parent=0 // pred_region
    _
  $region5: #{tile.18} parent=0 // pred_fallthru
    _
  %v4 = vld [vmem:[%s0] ss:$0 sm:$0xff]
  %5 = vst [vmem:[%s1] sm:$0xf] %v4

// kernel: tile.1
$region0: #{tile.1}
  %s0 = inlined_call_operand.vmem [shape: f32[4,2], index: 0, kind: input, shape index: {}]
  %s1 = inlined_call_operand.vmem [shape: f32[8,1], index: 1, kind: output, shape index: {}]
  $region1: #{tile.1} parent=0
    #allocation0 [shape = 'u8[4096]{0}', space=vmem, size = 0x1000, scoped, tag = 'scoped mem for input reshape']
    %s3 = sshllo.u32 0, 4
    %v4 = vld [vmem:[%s0] sm:%s3]
    %5 = vst [vmem:[#allocation0] sm:%s3] %v4
    %v6 = vld [vmem:[#allocation0] sm:$0xf]
    %vm7 = vcmask 7168
    %8 = vst.msk [vmem:[%s1] ss:$2 sm:$0xf] %vm7, %v6
    %v9 = vld [vmem:[#allocation0] sm:$0xf]
    %10 = vrot.lane.b32.xlu0 %v9, 127
    %v11 = vpop.permute.xlu0 %10
    %vm12 = vcmask 7168
    %s13 = scalar_lea.vmem %s1, 1
    %14 = vst.msk [vmem:[%s13] ss:$2 sm:$0xf] %vm12, %v11

// kernel: classical_net_forward.1
$region0: #{classical_net_forward.1}
  #allocation0 [shape = 'u32[]', space=smem, size = 0x4, offset = 0x4, fixed_abs, tag = 'smem constant byte address 0x4 - core index']
  #allocation1 [shape = 'u32[144,128]{1,0:T(1,128)}', space=vmem, size = 0x12000, scoped, tag = 'internal scratch']
  %s0 = inlined_call_operand.vmem [shape: f32[8,128], index: 0, kind: input, shape index: {}]
  %s1 = inlined_call_operand.vmem [shape: f32[32,8], index: 1, kind: input, shape index: {}]
  %s2 = inlined_call_operand.vmem [shape: f32[32,1], index: 2, kind: input, shape index: {}]
  %s3 = inlined_call_operand.vmem [shape: f32[8,32], index: 3, kind: input, shape index: {}]
  %s4 = inlined_call_operand.vmem [shape: f32[8,1], index: 4, kind: input, shape index: {}]
  %s5 = inlined_call_operand.vmem [shape: f32[8,128], index: 5, kind: output, shape index: {}]
  %s6 = sld [smem:[#allocation0]]
  $region30: #{classical_net_forward.1} parent=0
    _
  %s8 = ssub.s32 1, %s6
  %s9 = scalar_select 0, %s8, %s6
  // Predicated region
  $region2: #{classical_net_forward.1} parent=0 // pred_check
    _
  $region3: #{classical_net_forward.1} parent=0 // pred_check_branch
    %11 = sbr.rel (0) target = $region5
  $region4: #{classical_net_forward.1} parent=0 // pred_region
    _
  $region5: #{classical_net_forward.1} parent=0 // pred_fallthru
    _
  // Predicated region
  $region6: #{classical_net_forward.1} parent=0 // pred_check
    _
  $region7: #{classical_net_forward.1} parent=0 // pred_check_branch
    %13 = sbr.rel (0) target = $region9
  $region8: #{classical_net_forward.1} parent=0 // pred_region
    _
  $region9: #{classical_net_forward.1} parent=0 // pred_fallthru
    _
  // Predicated region
  $region10: #{classical_net_forward.1} parent=0 // pred_check
    _
  $region11: #{classical_net_forward.1} parent=0 // pred_check_branch
    %15 = sbr.rel (0) target = $region13
  $region12: #{classical_net_forward.1} parent=0 // pred_region
    _
  $region13: #{classical_net_forward.1} parent=0 // pred_fallthru
    _
  // Predicated region
  $region14: #{classical_net_forward.1} parent=0 // pred_check
    _
  $region15: #{classical_net_forward.1} parent=0 // pred_check_branch
    %17 = sbr.rel (0) target = $region17
  $region16: #{classical_net_forward.1} parent=0 // pred_region
    _
  $region17: #{classical_net_forward.1} parent=0 // pred_fallthru
    _
  // Predicated region
  $region18: #{classical_net_forward.1} parent=0 // pred_check
    _
  $region19: #{classical_net_forward.1} parent=0 // pred_check_branch
    %19 = sbr.rel (0) target = $region21
  $region20: #{classical_net_forward.1} parent=0 // pred_region
    _
  $region21: #{classical_net_forward.1} parent=0 // pred_fallthru
    _
  %v20 = vld [vmem:[%s1] sm:$0xff]
  %v21 = vld [vmem:[%s1 + $0x8] sm:$0xff]
  %v22 = vld [vmem:[%s1 + $0x10] sm:$0xff]
  %v23 = vld [vmem:[%s1 + $0x18] sm:$0xff]
  %v24 = vld [vmem:[%s0] sm:$0xff]
  %v25 = vld [vmem:[%s2] sm:$0xff]
  %v26 = vld [vmem:[%s2 + $0x8] sm:$0xff]
  %v27 = vld [vmem:[%s2 + $0x10] sm:$0xff]
  %v28 = vld [vmem:[%s2 + $0x18] sm:$0xff]
  %30 = vset.pattern.permute.xlu0 0
  %31 = vperm.xlu0 %30, %v25
  %v32 = vpop.permute.xlu0 %31
  %35 = vset.pattern.permute.xlu0 0
  %36 = vperm.xlu0 %35, %v26
  %v37 = vpop.permute.xlu0 %36
  %40 = vset.pattern.permute.xlu0 0
  %41 = vperm.xlu0 %40, %v27
  %v42 = vpop.permute.xlu0 %41
  %45 = vset.pattern.permute.xlu0 0
  %46 = vperm.xlu0 %45, %v28
  %v47 = vpop.permute.xlu0 %46
  %vm49 = vcmask 64512
  %v51 = vsel %vm49, %v20, 0
  %v54 = vsel %vm49, %v21, 0
  %v57 = vsel %vm49, %v22, 0
  %v60 = vsel %vm49, %v23, 0
  %62 = vmatprep.subr.mxu0 0.0
  %63 = vmatpush1.msra.mxu0 %v24
  %64 = vmatprep.subr.mxu0 0.0
  %65 = vmatpush1.msra.mxu0 0.0
  %66 = vmatprep.subr.mxu0 0.0
  %67 = vmatpush1.msra.mxu0 0.0
  %68 = vmatprep.subr.mxu0 0.0
  %69 = vmatpush1.msra.mxu0 0.0
  %70 = vmatprep.subr.mxu0 0.0
  %71 = vmatpush1.msra.mxu0 0.0
  %72 = vmatprep.subr.mxu0 0.0
  %73 = vmatpush1.msra.mxu0 0.0
  %74 = vmatprep.subr.mxu0 0.0
  %75 = vmatpush1.msra.mxu0 0.0
  %76 = vmatprep.subr.mxu0 0.0
  %77 = vmatpush1.msra.mxu0 0.0
  %78 = vmatprep.subr.mxu0 0.0
  %79 = vmatpush1.msra.mxu0 0.0
  %80 = vmatprep.subr.mxu0 0.0
  %81 = vmatpush1.msra.mxu0 0.0
  %82 = vmatprep.subr.mxu0 0.0
  %83 = vmatpush1.msra.mxu0 0.0
  %84 = vmatprep.subr.mxu0 0.0
  %85 = vmatpush1.msra.mxu0 0.0
  %86 = vmatprep.subr.mxu0 0.0
  %87 = vmatpush1.msra.mxu0 0.0
  %88 = vmatprep.subr.mxu0 0.0
  %89 = vmatpush1.msra.mxu0 0.0
  %90 = vmatprep.subr.mxu0 0.0
  %91 = vmatpush1.msra.mxu0 0.0
  %92 = vmatprep.subr.mxu0 0.0
  %93 = vmatpush1.msra.mxu0 0.0
  %94 = vmatprep.subr.mxu0 0.0
  %95 = vmatpush1.msra.mxu0 0.0
  %96 = vmatprep.subr.mxu0 0.0
  %97 = vmatpush1.msra.mxu0 0.0
  %98 = vmatprep.subr.mxu0 0.0
  %99 = vmatpush1.msra.mxu0 0.0
  %100 = vmatprep.subr.mxu0 0.0
  %101 = vmatpush1.msra.mxu0 0.0
  %102 = vmatprep.subr.mxu0 0.0
  %103 = vmatpush1.msra.mxu0 0.0
  %104 = vmatprep.subr.mxu0 0.0
  %105 = vmatpush1.msra.mxu0 0.0
  %106 = vmatprep.subr.mxu0 0.0
  %107 = vmatpush1.msra.mxu0 0.0
  %108 = vmatprep.subr.mxu0 0.0
  %109 = vmatpush1.msra.mxu0 0.0
  %110 = vmatprep.subr.mxu0 0.0
  %111 = vmatpush1.msra.mxu0 0.0
  %112 = vmatprep.subr.mxu0 0.0
  %113 = vmatpush1.msra.mxu0 0.0
  %114 = vmatprep.subr.mxu0 0.0
  %115 = vmatpush1.msra.mxu0 0.0
  %116 = vmatprep.subr.mxu0 0.0
  %117 = vmatpush1.msra.mxu0 0.0
  %118 = vmatprep.subr.mxu0 0.0
  %119 = vmatpush1.msra.mxu0 0.0
  %120 = vmatprep.subr.mxu0 0.0
  %121 = vmatpush1.msra.mxu0 0.0
  %122 = vmatprep.subr.mxu0 0.0
  %123 = vmatpush1.msra.mxu0 0.0
  %124 = vmatprep.subr.mxu0 0.0
  %125 = vmatpush1.msra.mxu0 0.0
  %126 = vmatprep.mubr.f32.mxu0 0.0
  %127 = vmatmul.mubr.f32.gmra.mrb[0].mxu0 %v51
  %v128 = vpop.f32.mrb[0].mxu0
  %v129 = vadd.f32 %v32, %v128
  %v130 = vpop.f32.mrb[0].mxu0
  %131 = vmatprep.mubr.f32.mxu0 0.0
  %132 = vmatmul.mubr.f32.gmra.mrb[0].mxu0 %v54
  %v133 = vpop.f32.mrb[0].mxu0
  %v134 = vadd.f32 %v37, %v133
  %v135 = vpop.f32.mrb[0].mxu0
  %136 = vmatprep.mubr.f32.mxu0 0.0
  %137 = vmatmul.mubr.f32.gmra.mrb[0].mxu0 %v57
  %v138 = vpop.f32.mrb[0].mxu0
  %v139 = vadd.f32 %v42, %v138
  %v140 = vpop.f32.mrb[0].mxu0
  %141 = vmatprep.mubr.f32.mxu0 0.0
  %142 = vmatmul.mubr.f32.gmra.mrb[0].mxu0 %v60
  %v143 = vpop.f32.mrb[0].mxu0
  %v144 = vadd.f32 %v47, %v143
  %v145 = vpop.f32.mrb[0].mxu0
  %146 = vdwg.mxu0
  %v147 = vmax.f32 %v129, 0.0
  %v148 = vmax.f32 %v134, 0.0
  %v149 = vmax.f32 %v139, 0.0
  %v150 = vmax.f32 %v144, 0.0
  %v151 = vld [vmem:[%s3] sm:$0xff]
  %v152 = vld [vmem:[%s4] sm:$0xff]
  %154 = vset.pattern.permute.xlu0 0
  %155 = vperm.xlu0 %154, %v152
  %v156 = vpop.permute.xlu0 %155
  %vm158 = vcmask 261120
  %v160 = vsel %vm158, %v151, 0
  %162 = vmatprep.subr.mxu0 0.0
  %163 = vmatpush1.msra.mxu0 %v147
  %164 = vmatprep.subr.mxu0 0.0
  %165 = vmatpush1.msra.mxu0 %v148
  %166 = vmatprep.subr.mxu0 0.0
  %167 = vmatpush1.msra.mxu0 %v149
  %168 = vmatprep.subr.mxu0 0.0
  %169 = vmatpush1.msra.mxu0 %v150
  %170 = vmatprep.subr.mxu0 0.0
  %171 = vmatpush1.msra.mxu0 0.0
  %172 = vmatprep.subr.mxu0 0.0
  %173 = vmatpush1.msra.mxu0 0.0
  %174 = vmatprep.subr.mxu0 0.0
  %175 = vmatpush1.msra.mxu0 0.0
  %176 = vmatprep.subr.mxu0 0.0
  %177 = vmatpush1.msra.mxu0 0.0
  %178 = vmatprep.subr.mxu0 0.0
  %179 = vmatpush1.msra.mxu0 0.0
  %180 = vmatprep.subr.mxu0 0.0
  %181 = vmatpush1.msra.mxu0 0.0
  %182 = vmatprep.subr.mxu0 0.0
  %183 = vmatpush1.msra.mxu0 0.0
  %184 = vmatprep.subr.mxu0 0.0
  %185 = vmatpush1.msra.mxu0 0.0
  %186 = vmatprep.subr.mxu0 0.0
  %187 = vmatpush1.msra.mxu0 0.0
  %188 = vmatprep.subr.mxu0 0.0
  %189 = vmatpush1.msra.mxu0 0.0
  %190 = vmatprep.subr.mxu0 0.0
  %191 = vmatpush1.msra.mxu0 0.0
  %192 = vmatprep.subr.mxu0 0.0
  %193 = vmatpush1.msra.mxu0 0.0
  %194 = vmatprep.subr.mxu0 0.0
  %195 = vmatpush1.msra.mxu0 0.0
  %196 = vmatprep.subr.mxu0 0.0
  %197 = vmatpush1.msra.mxu0 0.0
  %198 = vmatprep.subr.mxu0 0.0
  %199 = vmatpush1.msra.mxu0 0.0
  %200 = vmatprep.subr.mxu0 0.0
  %201 = vmatpush1.msra.mxu0 0.0
  %202 = vmatprep.subr.mxu0 0.0
  %203 = vmatpush1.msra.mxu0 0.0
  %204 = vmatprep.subr.mxu0 0.0
  %205 = vmatpush1.msra.mxu0 0.0
  %206 = vmatprep.subr.mxu0 0.0
  %207 = vmatpush1.msra.mxu0 0.0
  %208 = vmatprep.subr.mxu0 0.0
  %209 = vmatpush1.msra.mxu0 0.0
  %210 = vmatprep.subr.mxu0 0.0
  %211 = vmatpush1.msra.mxu0 0.0
  %212 = vmatprep.subr.mxu0 0.0
  %213 = vmatpush1.msra.mxu0 0.0
  %214 = vmatprep.subr.mxu0 0.0
  %215 = vmatpush1.msra.mxu0 0.0
  %216 = vmatprep.subr.mxu0 0.0
  %217 = vmatpush1.msra.mxu0 0.0
  %218 = vmatprep.subr.mxu0 0.0
  %219 = vmatpush1.msra.mxu0 0.0
  %220 = vmatprep.subr.mxu0 0.0
  %221 = vmatpush1.msra.mxu0 0.0
  %222 = vmatprep.subr.mxu0 0.0
  %223 = vmatpush1.msra.mxu0 0.0
  %224 = vmatprep.subr.mxu0 0.0
  %225 = vmatpush1.msra.mxu0 0.0
  %226 = vmatprep.mubr.f32.mxu0 0.0
  %227 = vmatmul.mubr.f32.gmra.mrb[0].mxu0 %v160
  %v228 = vpop.f32.mrb[0].mxu0
  %v229 = vadd.f32 %v156, %v228
  %v230 = vpop.f32.mrb[0].mxu0
  %231 = vdwg.mxu0
  %232 = vst [vmem:[%s5] sm:$0xff] %v229
  // Predicated region
  $region22: #{classical_net_forward.1} parent=0 // pred_check
    _
  $region23: #{classical_net_forward.1} parent=0 // pred_check_branch
    %234 = sbr.rel (0) target = $region25
  $region24: #{classical_net_forward.1} parent=0 // pred_region
    _
  $region25: #{classical_net_forward.1} parent=0 // pred_fallthru
    _
  // Predicated region
  $region26: #{classical_net_forward.1} parent=0 // pred_check
    _
  $region27: #{classical_net_forward.1} parent=0 // pred_check_branch
    %236 = sbr.rel (0) target = $region29
  $region28: #{classical_net_forward.1} parent=0 // pred_region
    _
  $region29: #{classical_net_forward.1} parent=0 // pred_fallthru
    _

</llo_original>
